<compile_context>
chip_gen: v6e
topology: v6e:2x2x1
jax: 0.10.0
libtpu: 0.0.40
codegen_flags: <defaults>
</compile_context>

<pallas_src>
import jax
import jax.numpy as jnp
from jax import lax
from jax.experimental import pallas as pl
from jax.experimental.pallas import tpu as pltpu

T_TEMP = 0.1   # self.T
NEG_M = 1      # self.negM


def batch_criterion_kernel(x_ref, loss_ref):
    x = x_ref[...].astype(jnp.float32)                  # (n, D), n = 2B
    n = x.shape[0]
    b = n // 2
    inv_t = jnp.float32(1.0 / T_TEMP)

    # Fold 1/T into one matmul operand instead of scaling the (n, n) matrix.
    xs = x * inv_t                                       # (n, D) = x / T

    # pos is identical for rows i and i+B: pos_half[i] = (f1_i · f2_i) / T.
    pos_t_half = jnp.sum(x[:b] * xs[b:], axis=1, keepdims=True)   # (B, 1)
    pos = jnp.exp(jnp.concatenate([pos_t_half, pos_t_half], axis=0))  # (n, 1)

    # gram / T = x @ (x / T)^T  (MXU, f32 accumulate).
    gram_t = lax.dot_general(
        x, xs, (((1,), (1,)), ((), ())),
        preferred_element_type=jnp.float32,
    )                                                    # (n, n)

    # all_prob = exp(gram / T) with a zeroed diagonal (single select).
    rows = lax.broadcasted_iota(jnp.int32, (n, n), 0)
    cols = lax.broadcasted_iota(jnp.int32, (n, n), 1)
    all_prob = jnp.where(rows == cols, jnp.float32(0.0), jnp.exp(gram_t))

    # negM == 1 branch: all_div = all_prob.sum(1); one reciprocal per row,
    # then broadcast multiplies replace the n^2 divides.
    all_div = jnp.sum(all_prob, axis=1, keepdims=True)   # (n, 1)
    inv_div = pl.reciprocal(all_div, approx=False)       # (n, 1)

    lnPmt = pos * inv_div                                # (n, 1)

    # Row-sum of log(1 - all_prob / all_div); the diagonal contributes
    # log(1 - 0) = 0, so no extra masking is needed here.
    lnPon_row = jnp.sum(jnp.log(1.0 - all_prob * inv_div), axis=1,
                        keepdims=True)                   # (n, 1)
    lnPon = lnPon_row - jnp.log(1.0 - lnPmt)             # (n, 1)

    lnPmtsum = jnp.sum(jnp.log(lnPmt))
    lnPonsum = jnp.sum(lnPon) * NEG_M
    loss = -(lnPmtsum + lnPonsum) / n

    loss_ref[0, 0] = loss


def batch_criterion(f1, f2):
    """f1, f2: (B, D) feature batches. Returns scalar loss (float32)."""
    # Concatenate once in the wrapper; the kernel sees a single (2B, D) block.
    x = jnp.concatenate([f1, f2], axis=0).astype(jnp.float32)
    out = pl.pallas_call(
        batch_criterion_kernel,
        out_shape=jax.ShapeDtypeStruct((1, 1), jnp.float32),
        in_specs=[pl.BlockSpec(memory_space=pltpu.VMEM)],
        out_specs=pl.BlockSpec(memory_space=pltpu.SMEM),
    )(x)
    return out[0, 0]


def batch_criterion_ref(f1, f2):
    """Pure-JAX reference mirroring the PyTorch forward (negM == 1)."""
    x = jnp.concatenate([f1, f2], axis=0).astype(jnp.float32)
    n = x.shape[0]
    rx = jnp.concatenate([x[n // 2:], x[:n // 2]], axis=0)
    pos = jnp.exp(jnp.sum(x * rx, axis=1) / T_TEMP)
    all_prob = jnp.exp(x @ x.T / T_TEMP) * (1.0 - jnp.eye(n, dtype=jnp.float32))
    all_div = jnp.sum(all_prob, axis=1)
    lnPmt = pos / all_div
    lnPon = jnp.log(1.0 - all_prob / all_div[:, None])
    lnPon = jnp.sum(lnPon, axis=1) - jnp.log(1.0 - lnPmt)
    lnPmt = jnp.log(lnPmt)
    return -(jnp.sum(lnPmt) + jnp.sum(lnPon) * NEG_M) / n


if __name__ == "__main__":
    # Module __init__ takes only batchSize (unused for shapes); forward expects
    # two feature batches f1, f2 of shape (B, D).  The `dd` argument of the
    # PyTorch forward is unused.  Use B=8, D=32.
    B, D = 8, 32
    key = jax.random.PRNGKey(0)
    k1, k2 = jax.random.split(key)
    # L2-normalized features (as the NCE model produces), deterministic.
    f1 = jax.random.normal(k1, (B, D), dtype=jnp.float32)
    f2 = jax.random.normal(k2, (B, D), dtype=jnp.float32)
    f1 = f1 / jnp.linalg.norm(f1, axis=1, keepdims=True)
    f2 = f2 / jnp.linalg.norm(f2, axis=1, keepdims=True)

    loss = jax.block_until_ready(batch_criterion(f1, f2))
    ref = jax.block_until_ready(batch_criterion_ref(f1, f2))

    assert jnp.isfinite(loss), "loss is not finite"
    assert jnp.allclose(loss, ref, rtol=1e-4, atol=1e-4), (loss, ref)
    print("KERNEL_OK")
</pallas_src>

<mosaic_0001>
module attributes {stable_mosaic.version = 11 : i64} {
  func.func @batch_criterion_kernel(%arg0: memref<16x32xf32, #tpu.memory_space<vmem>>, %arg1: memref<1x1xf32, #tpu.memory_space<smem>>) attributes {dimension_semantics = [], scalar_prefetch = 0 : i64, scratch_operands = 0 : i64, tpu.core_type = #tpu.core_type<tc>} {
    %c0 = arith.constant 0 : index
    %c0_0 = arith.constant 0 : index
    %0 = vector.load %arg0[%c0, %c0_0] : memref<16x32xf32, #tpu.memory_space<vmem>>, vector<16x32xf32>
    %cst = arith.constant 1.000000e+01 : f32
    %1 = vector.broadcast %cst : f32 to vector<16x32xf32>
    %2 = arith.mulf %0, %1 : vector<16x32xf32>
    %3 = vector.extract_strided_slice %0 {offsets = [0, 0], sizes = [8, 32], strides = [1, 1]} : vector<16x32xf32> to vector<8x32xf32>
    %4 = vector.extract_strided_slice %2 {offsets = [8, 0], sizes = [8, 32], strides = [1, 1]} : vector<16x32xf32> to vector<8x32xf32>
    %5 = arith.mulf %3, %4 : vector<8x32xf32>
    %cst_1 = arith.constant dense<0.000000e+00> : vector<8xf32>
    %6 = vector.multi_reduction <add>, %5, %cst_1 [1] : vector<8x32xf32> to vector<8xf32>
    %7 = vector.shape_cast %6 : vector<8xf32> to vector<8x1xf32>
    %8 = tpu.concatenate %7, %7 in 0 : vector<8x1xf32>, vector<8x1xf32> -> vector<16x1xf32>
    %9 = math.exp %8 : vector<16x1xf32>
    %cst_2 = arith.constant dense<0.000000e+00> : vector<16x16xf32>
    %10 = tpu.matmul %0, %2, %cst_2 {dimension_numbers = #tpu.dot_dimension_numbers<[1], [1], [0], [0], [0, 0, 1, 0], [], []>} : vector<16x32xf32>, vector<16x32xf32>, vector<16x16xf32> -> vector<16x16xf32>
    %11 = tpu.iota {dimensions = array<i32: 0>} : vector<16x16xi32>
    %12 = tpu.iota {dimensions = array<i32: 1>} : vector<16x16xi32>
    %13 = arith.cmpi eq, %11, %12 : vector<16x16xi32>
    %14 = math.exp %10 : vector<16x16xf32>
    %cst_3 = arith.constant 0.000000e+00 : f32
    %15 = vector.broadcast %cst_3 : f32 to vector<16x16xf32>
    %16 = arith.select %13, %15, %14 : vector<16x16xi1>, vector<16x16xf32>
    %cst_4 = arith.constant dense<0.000000e+00> : vector<16xf32>
    %17 = vector.multi_reduction <add>, %16, %cst_4 [1] : vector<16x16xf32> to vector<16xf32>
    %18 = vector.shape_cast %17 : vector<16xf32> to vector<16x1xf32>
    %19 = tpu.reciprocal %18 : vector<16x1xf32> -> vector<16x1xf32>
    %20 = arith.mulf %9, %19 : vector<16x1xf32>
    %21 = vector.broadcast %19 : vector<16x1xf32> to vector<16x16xf32>
    %22 = arith.mulf %16, %21 : vector<16x16xf32>
    %cst_5 = arith.constant 1.000000e+00 : f32
    %23 = vector.broadcast %cst_5 : f32 to vector<16x16xf32>
    %24 = arith.subf %23, %22 : vector<16x16xf32>
    %25 = math.log %24 : vector<16x16xf32>
    %cst_6 = arith.constant dense<0.000000e+00> : vector<16xf32>
    %26 = vector.multi_reduction <add>, %25, %cst_6 [1] : vector<16x16xf32> to vector<16xf32>
    %27 = vector.shape_cast %26 : vector<16xf32> to vector<16x1xf32>
    %cst_7 = arith.constant 1.000000e+00 : f32
    %28 = vector.broadcast %cst_7 : f32 to vector<16x1xf32>
    %29 = arith.subf %28, %20 : vector<16x1xf32>
    %30 = math.log %29 : vector<16x1xf32>
    %31 = arith.subf %27, %30 : vector<16x1xf32>
    %32 = math.log %20 : vector<16x1xf32>
    %33 = vector.shape_cast %32 : vector<16x1xf32> to vector<1x16x1xf32>
    %cst_8 = arith.constant dense<0.000000e+00> : vector<1xf32>
    %34 = vector.multi_reduction <add>, %33, %cst_8 [1, 2] : vector<1x16x1xf32> to vector<1xf32>
    %35 = vector.shape_cast %34 : vector<1xf32> to vector<1x1x1xf32>
    %36 = vector.extract %35[0, 0, 0] : f32 from vector<1x1x1xf32>
    %37 = vector.shape_cast %31 : vector<16x1xf32> to vector<1x16x1xf32>
    %cst_9 = arith.constant dense<0.000000e+00> : vector<1xf32>
    %38 = vector.multi_reduction <add>, %37, %cst_9 [1, 2] : vector<1x16x1xf32> to vector<1xf32>
    %39 = vector.shape_cast %38 : vector<1xf32> to vector<1x1x1xf32>
    %40 = vector.extract %39[0, 0, 0] : f32 from vector<1x1x1xf32>
    %cst_10 = arith.constant 1.000000e+00 : f32
    %41 = arith.mulf %40, %cst_10 : f32
    %42 = arith.addf %36, %41 : f32
    %cst_11 = arith.constant 0.000000e+00 : f32
    %43 = arith.subf %cst_11, %42 : f32
    %cst_12 = arith.constant 1.600000e+01 : f32
    %44 = arith.divf %43, %cst_12 : f32
    %c0_13 = arith.constant 0 : index
    %c0_14 = arith.constant 0 : index
    %45 = memref.load %arg1[%c0_13, %c0_14] : memref<1x1xf32, #tpu.memory_space<smem>>
    memref.store %44, %arg1[%c0_13, %c0_14] : memref<1x1xf32, #tpu.memory_space<smem>>
    return
  }
}

</mosaic_0001>

<llo_original>
// kernel: tpu_custom_call.1
$region0: #{tpu_custom_call.1}
  #allocation0 [shape = 'u32[]', space=smem, size = 0x4, offset = 0x4, fixed_abs, tag = 'smem constant byte address 0x4 - core index']
  #allocation1 [shape = 'u32[144,128]{1,0:T(1,128)}', space=vmem, size = 0x12000, scoped, tag = 'internal scratch']
  %s0 = inlined_call_operand.hbm [shape: f32[16,32], index: 0, kind: input, shape index: {}]
  %s1 = inlined_call_operand.hbm [shape: f32[1,1], index: 1, kind: output, shape index: {}]
  %s2 = sld [smem:[#allocation0]]
  $region18: #{tpu_custom_call.1} parent=0
    _
  %s4 = ssub.s32 1, %s2
  %s5 = scalar_select 0, %s4, %s2
  $region1: #{tpu_custom_call.1} parent=0
    #allocation2 [shape = 'u8[8192]{0}', space=vmem, size = 0x2000, scoped, tag = 'input window, operand 0, single buffered']
    #allocation3 [shape = 's32[1]{0}', space=sflag, size = 0x4, scoped, tag = 'scoped memory for tpu_custom_call.1']
    #allocation4 [shape = 's32[1]{0}', space=sflag, size = 0x4, scoped, tag = 'scoped memory for tpu_custom_call.1']
    #allocation5 [shape = 'u8[512]{0}', space=smem, size = 0x200, scoped, tag = 'output window, operand 0, single buffered']
    %6 = vsyncpa [#allocation3], 0
    %7 = vsyncpa [#allocation4], 0
    // Predicated region
    $region2: #{tpu_custom_call.1} parent=1 // pred_check
      _
    $region3: #{tpu_custom_call.1} parent=1 // pred_check_branch
      %9 = sbr.rel (0) target = $region5
    $region4: #{tpu_custom_call.1} parent=1 // pred_region
      %s11 = ssub.s32 256, 256
      %12 = vsyncadd [#allocation3], %s11
      %s13 = sshll.u32 [#allocation2], 4
      %s14 = int_to_ptr.vmem [resolvable:$true] %s13
      %19 = dma.hbm_to_vmem [thread:$0]  %s0, 256, %s14, [#allocation3], 128, 128, 8
    $region5: #{tpu_custom_call.1} parent=1 // pred_fallthru
      _
    // Predicated region
    $region6: #{tpu_custom_call.1} parent=1 // pred_check
      _
    $region7: #{tpu_custom_call.1} parent=1 // pred_check_branch
      %21 = sbr.rel (0) target = $region9
    $region8: #{tpu_custom_call.1} parent=1 // pred_region
      %22 = dma.done [#allocation3], 256
    $region9: #{tpu_custom_call.1} parent=1 // pred_fallthru
      _
    %v23 = vld [vmem:[#allocation2] sm:$0xff]
    %v24 = vld [vmem:[#allocation2 + $0x8] sm:$0xff]
    %v25 = vmul.f32 %v23, 10.0
    %v26 = vmul.f32 %v24, 10.0
    %v27 = vmul.f32 %v23, %v26
    %vm28 = vcmask 261120
    %v29 = vsel %vm28, %v27, 0.0
    %30 = vadd.xlane.f32.xlu0 %v29
    %v31 = vpop.xlane.xlu0 %30
    %v32 = vmul.f32 %v31, 1.442695
    %v33 = vpow.pop %v32
    %v35 = vsel %vm28, %v23, 0
    %v38 = vsel %vm28, %v24, 0
    %v41 = vsel %vm28, %v25, 0
    %v44 = vsel %vm28, %v26, 0
    %46 = vmatprep.subr.mxu0 0.0
    %47 = vmatpush1.xpose.msra.mxu0 0.0
    %48 = vmatprep.subr.mxu0 0.0
    %49 = vmatpush1.xpose.msra.mxu0 0.0
    %50 = vmatprep.subr.mxu0 0.0
    %51 = vmatpush1.xpose.msra.mxu0 0.0
    %52 = vmatprep.subr.mxu0 0.0
    %53 = vmatpush1.xpose.msra.mxu0 0.0
    %54 = vmatprep.subr.mxu0 0.0
    %55 = vmatpush1.xpose.msra.mxu0 0.0
    %56 = vmatprep.subr.mxu0 0.0
    %57 = vmatpush1.xpose.msra.mxu0 0.0
    %58 = vmatprep.subr.mxu0 0.0
    %59 = vmatpush1.xpose.msra.mxu0 0.0
    %60 = vmatprep.subr.mxu0 0.0
    %61 = vmatpush1.xpose.msra.mxu0 0.0
    %62 = vmatprep.subr.mxu0 0.0
    %63 = vmatpush1.xpose.msra.mxu0 0.0
    %64 = vmatprep.subr.mxu0 0.0
    %65 = vmatpush1.xpose.msra.mxu0 0.0
    %66 = vmatprep.subr.mxu0 0.0
    %67 = vmatpush1.xpose.msra.mxu0 0.0
    %68 = vmatprep.subr.mxu0 0.0
    %69 = vmatpush1.xpose.msra.mxu0 0.0
    %70 = vmatprep.subr.mxu0 0.0
    %71 = vmatpush1.xpose.msra.mxu0 0.0
    %72 = vmatprep.subr.mxu0 0.0
    %73 = vmatpush1.xpose.msra.mxu0 0.0
    %74 = vmatprep.subr.mxu0 0.0
    %75 = vmatpush1.xpose.msra.mxu0 %v44
    %76 = vmatprep.subr.mxu0 0.0
    %77 = vmatpush1.xpose.msra.mxu0 %v41
    %78 = vmatprep.subr.mxu0 0.0
    %79 = vmatpush2.xpose.msra.mxu0 0.0
    %80 = vmatprep.subr.mxu0 0.0
    %81 = vmatpush2.xpose.msra.mxu0 0.0
    %82 = vmatprep.subr.mxu0 0.0
    %83 = vmatpush2.xpose.msra.mxu0 0.0
    %84 = vmatprep.subr.mxu0 0.0
    %85 = vmatpush2.xpose.msra.mxu0 0.0
    %86 = vmatprep.subr.mxu0 0.0
    %87 = vmatpush2.xpose.msra.mxu0 0.0
    %88 = vmatprep.subr.mxu0 0.0
    %89 = vmatpush2.xpose.msra.mxu0 0.0
    %90 = vmatprep.subr.mxu0 0.0
    %91 = vmatpush2.xpose.msra.mxu0 0.0
    %92 = vmatprep.subr.mxu0 0.0
    %93 = vmatpush2.xpose.msra.mxu0 0.0
    %94 = vmatprep.subr.mxu0 0.0
    %95 = vmatpush2.xpose.msra.mxu0 0.0
    %96 = vmatprep.subr.mxu0 0.0
    %97 = vmatpush2.xpose.msra.mxu0 0.0
    %98 = vmatprep.subr.mxu0 0.0
    %99 = vmatpush2.xpose.msra.mxu0 0.0
    %100 = vmatprep.subr.mxu0 0.0
    %101 = vmatpush2.xpose.msra.mxu0 0.0
    %102 = vmatprep.subr.mxu0 0.0
    %103 = vmatpush2.xpose.msra.mxu0 0.0
    %104 = vmatprep.subr.mxu0 0.0
    %105 = vmatpush2.xpose.msra.mxu0 0.0
    %106 = vmatprep.subr.mxu0 0.0
    %107 = vmatpush2.xpose.msra.mxu0 0.0
    %108 = vmatprep.subr.mxu0 0.0
    %109 = vmatpush2.xpose.msra.mxu0 0.0
    %110 = vmatprep.mubr.f32.mxu0 0.0
    %111 = vmatmul.mubr.f32.gmra.mxu0 %v35
    %v112 = vpop.f32.mrf.mxu0
    %v113 = vadd.f32 0.0, %v112
    %v114 = vpop.f32.mrf.mxu0
    %115 = vmatprep.mubr.f32.mxu0 0.0
    %116 = vmatmul.mubr.f32.gmra.mxu0 %v38
    %v117 = vpop.f32.mrf.mxu0
    %v118 = vadd.f32 0.0, %v117
    %v119 = vpop.f32.mrf.mxu0
    %120 = vdwg.mxu0
    %v121 = vlaneseq
    %v122 = vshrl.u32 %v121, 7
    %v123 = vadd.s32 %v122, 8
    %v124 = vlaneseq
    %v125 = vand.u32 %v124, 127
    %vm126 = vcmp.eq.s32.totalorder %v122, %v125
    %vm127 = vcmp.eq.s32.totalorder %v123, %v125
    %v128 = vmul.f32 %v113, 1.442695
    %v129 = vpow.pop %v128
    %v130 = vmul.f32 %v118, 1.442695
    %v131 = vpow.pop %v130
    %v132 = vsel %vm126, 0.0, %v129
    %v133 = vsel %vm127, 0.0, %v131
    %vm134 = vcmask 130048
    %v135 = vsel %vm134, %v132, 0.0
    %136 = vadd.xlane.f32.xlu0 %v135
    %v137 = vpop.xlane.xlu0 %136
    %v138 = vsel %vm134, %v133, 0.0
    %139 = vadd.xlane.f32.xlu0 %v138
    %v140 = vpop.xlane.xlu0 %139
    %v141 = vrcp.pop %v137
    %v142 = vrcp.pop %v140
    %v143 = vmul.f32 %v33, %v141
    %v144 = vmul.f32 %v33, %v142
    %v145 = vmul.f32 %v132, %v141
    %v146 = vmul.f32 %v133, %v142
    %v147 = vsub.f32 1.0, %v145
    %v148 = vsub.f32 1.0, %v146
    %v149 = vlog2.pop %v147
    %v150 = vmul.f32 %v149, 0.6931472
    %v151 = vlog2.pop %v148
    %v152 = vmul.f32 %v151, 0.6931472
    %v153 = vsel %vm134, %v150, 0.0
    %154 = vadd.xlane.f32.xlu0 %v153
    %v155 = vpop.xlane.xlu0 %154
    %v156 = vsel %vm134, %v152, 0.0
    %157 = vadd.xlane.f32.xlu0 %v156
    %v158 = vpop.xlane.xlu0 %157
    %v159 = vsub.f32 1.0, %v143
    %v160 = vsub.f32 1.0, %v144
    %v161 = vlog2.pop %v159
    %v162 = vmul.f32 %v161, 0.6931472
    %v163 = vlog2.pop %v160
    %v164 = vmul.f32 %v163, 0.6931472
    %v165 = vsub.f32 %v155, %v162
    %v166 = vsub.f32 %v158, %v164
    %v167 = vlog2.pop %v143
    %v168 = vmul.f32 %v167, 0.6931472
    %v169 = vlog2.pop %v144
    %v170 = vmul.f32 %v169, 0.6931472
    %vm171 = vcmask 7168
    %v172 = vsel %vm171, %v168, 0.0
    %v173 = vsel %vm171, %v170, 0.0
    %v174 = vadd.f32 %v172, %v173
    %175 = vadd.xlane.f32.xlu0 %v174
    %v176 = vpop.xlane.xlu0 %175
    %v177 = vrot.slane %v176, 4
    %v178 = vadd.f32 %v176, %v177
    %v179 = vrot.slane %v178, 2
    %v180 = vadd.f32 %v178, %v179
    %v181 = vrot.slane %v180, 1
    %v182 = vadd.f32 %v180, %v181
    %s183 = vtos %v182
    %v184 = vsel %vm171, %v165, 0.0
    %v185 = vsel %vm171, %v166, 0.0
    %v186 = vadd.f32 %v184, %v185
    %187 = vadd.xlane.f32.xlu0 %v186
    %v188 = vpop.xlane.xlu0 %187
    %v189 = vrot.slane %v188, 4
    %v190 = vadd.f32 %v188, %v189
    %v191 = vrot.slane %v190, 2
    %v192 = vadd.f32 %v190, %v191
    %v193 = vrot.slane %v192, 1
    %v194 = vadd.f32 %v192, %v193
    %s195 = vtos %v194
    %s196 = sadd.f32 %s183, %s195
    %s197 = ssub.f32 0.0, %s196
    %v198 = vrcp.pop 16.0
    %s199 = vtos %v198
    %s200 = smul.f32 %s197, %s199
    %s201 = scalar_lea.smem [#allocation5], 0
    %202 = sst [smem:[%s201]] %s200
    // Predicated region
    $region10: #{tpu_custom_call.1} parent=1 // pred_check
      _
    $region11: #{tpu_custom_call.1} parent=1 // pred_check_branch
      %204 = sbr.rel (0) target = $region13
    $region12: #{tpu_custom_call.1} parent=1 // pred_region
      %s206 = ssub.s32 16, 16
      %207 = vsyncadd [#allocation4], %s206
      %210 = dma.smem_to_hbm [#allocation5], 16, %s1, [#allocation4]
    $region13: #{tpu_custom_call.1} parent=1 // pred_fallthru
      _
    // Predicated region
    $region14: #{tpu_custom_call.1} parent=1 // pred_check
      _
    $region15: #{tpu_custom_call.1} parent=1 // pred_check_branch
      %212 = sbr.rel (0) target = $region17
    $region16: #{tpu_custom_call.1} parent=1 // pred_region
      %213 = dma.done [#allocation4], 16
    $region17: #{tpu_custom_call.1} parent=1 // pred_fallthru
      _
    %214 = sfence
    %215 = vsyncpa [#allocation3], 1
    %216 = vsyncpa [#allocation4], 1

</llo_original>
